<compile_context>
chip_gen: v7x
topology: tpu7x:2x2x1
jax: 0.10.0
libtpu: 0.0.40
codegen_flags: <defaults>
</compile_context>

<pallas_src>
import functools

import jax
import jax.numpy as jnp
import numpy as np
from jax.experimental import pallas as pl
from jax.experimental.pallas import tpu as pltpu


# ----------------------------------------------------------------------------
# Pallas kernel: lane-axis concat of two (Nb, L1) / (Nb, L2) VMEM tiles
# ----------------------------------------------------------------------------
def _concat_lanes_kernel(a_ref, b_ref, o_ref):
    l1 = a_ref.shape[-1]
    o_ref[:, :l1] = a_ref[...]
    o_ref[:, l1:] = b_ref[...]


def _pick_batch_block(n, per_row_bytes, target_bytes=4 << 20):
    """Largest divisor of n whose per-step HBM traffic stays near target_bytes."""
    if n * per_row_bytes <= target_bytes:
        return n
    want = max(1, target_bytes // per_row_bytes)
    return max(d for d in range(1, n + 1) if n % d == 0 and d <= want)


def concat_channels(a_nchw, b_nchw):
    """torch.cat((a, b), dim=1) for NCHW tensors, as one Pallas kernel."""
    N, C1, H, W = a_nchw.shape
    Nb_, C2, Hb, Wb = b_nchw.shape
    assert (Nb_, Hb, Wb) == (N, H, W), "non-channel dims must match for cat(dim=1)"
    assert a_nchw.dtype == b_nchw.dtype
    dtype = a_nchw.dtype
    HW = H * W
    L1, L2 = C1 * HW, C2 * HW
    Lout = L1 + L2

    # Free views (row-major contiguous): fold C and H*W into one lane axis.
    a2 = a_nchw.reshape(N, L1)
    b2 = b_nchw.reshape(N, L2)

    itemsize = jnp.dtype(dtype).itemsize
    # Per batch row: read A + read B + write out.
    per_row_bytes = 2 * (L1 + L2) * itemsize
    nb = _pick_batch_block(N, per_row_bytes)
    grid = (N // nb,)

    out = pl.pallas_call(
        _concat_lanes_kernel,
        out_shape=jax.ShapeDtypeStruct((N, Lout), dtype),
        grid=grid,
        in_specs=[
            pl.BlockSpec((nb, L1), lambda i: (i, 0)),
            pl.BlockSpec((nb, L2), lambda i: (i, 0)),
        ],
        out_specs=pl.BlockSpec((nb, Lout), lambda i: (i, 0)),
        compiler_params=pltpu.CompilerParams(
            dimension_semantics=("parallel",),
            vmem_limit_bytes=32 * 1024 * 1024,
        ),
        cost_estimate=pl.CostEstimate(
            flops=0,
            transcendentals=0,
            bytes_accessed=int(2 * (a2.size + b2.size) * itemsize),
        ),
    )(a2, b2)
    return out.reshape(N, C1 + C2, H, W)


# ----------------------------------------------------------------------------
# ConcatBlock.forward
# ----------------------------------------------------------------------------
def concat_block_forward(inp, another_input, *, broadcasting_needed=False):
    n, c, h, w = inp.shape
    if broadcasting_needed:
        # TODO(synk): the broadcasting_needed=True branch of the original module
        # cannot actually run in PyTorch (expand(h, w) yields a 2-D tensor which
        # torch.cat rejects against a 4-D input); best-effort interpretation:
        # a single shared channel broadcast over the batch.
        modified = jnp.broadcast_to(another_input, (h, w))
        modified = jnp.broadcast_to(modified[None, None, :, :], (n, 1, h, w))
    else:
        modified = another_input
    if modified.ndim == 3:
        modified = modified[None]  # unsqueeze(0)
    # torch.cat promotes both operands to the common result type.
    out_dtype = jnp.promote_types(inp.dtype, modified.dtype)
    return concat_channels(inp.astype(out_dtype), modified.astype(out_dtype))


# ----------------------------------------------------------------------------
if __name__ == "__main__":
    key = jax.random.PRNGKey(0)
    k1, k2 = jax.random.split(key)

    N, C1, C2, H, W = 2, 4, 3, 16, 16
    x = jax.random.normal(k1, (N, C1, H, W), jnp.float32)
    y = jax.random.normal(k2, (N, C2, H, W), jnp.float32)

    fwd = jax.jit(functools.partial(concat_block_forward,
                                    broadcasting_needed=False))
    out = jax.block_until_ready(fwd(x, y))
    assert out.shape == (N, C1 + C2, H, W) and out.dtype == jnp.float32

    ref = jnp.concatenate([x, y], axis=1)
    np.testing.assert_array_equal(np.asarray(out), np.asarray(ref))

    print("KERNEL_OK")
</pallas_src>

<mosaic_0001>
module attributes {stable_mosaic.version = 11 : i64} {
  func.func @_concat_lanes_kernel(%arg0: i32, %arg1: memref<2x1024xf32, #tpu.memory_space<vmem>>, %arg2: memref<2x768xf32, #tpu.memory_space<vmem>>, %arg3: memref<2x1792xf32, #tpu.memory_space<vmem>>) attributes {dimension_semantics = [#tpu.dimension_semantics<parallel>], iteration_bounds = array<i64: 1>, scalar_prefetch = 0 : i64, scratch_operands = 0 : i64, tpu.core_type = #tpu.core_type<tc>, window_params = [{transform_indices = @transform_0, window_bounds = array<i64: 2, 1024>}, {transform_indices = @transform_1, window_bounds = array<i64: 2, 768>}, {transform_indices = @transform_2, window_bounds = array<i64: 2, 1792>}]} {
    %c0 = arith.constant 0 : index
    %c0_0 = arith.constant 0 : index
    %0 = vector.load %arg1[%c0, %c0_0] : memref<2x1024xf32, #tpu.memory_space<vmem>>, vector<2x1024xf32>
    %c0_1 = arith.constant 0 : index
    %c0_2 = arith.constant 0 : index
    %1 = vector.load %arg3[%c0_1, %c0_2] : memref<2x1792xf32, #tpu.memory_space<vmem>>, vector<2x1024xf32>
    tpu.vector_store %arg3[%c0_1, %c0_2], %0 {strides = array<i32>} : memref<2x1792xf32, #tpu.memory_space<vmem>>, vector<2x1024xf32>,
    %c0_3 = arith.constant 0 : index
    %c0_4 = arith.constant 0 : index
    %2 = vector.load %arg2[%c0_3, %c0_4] : memref<2x768xf32, #tpu.memory_space<vmem>>, vector<2x768xf32>
    %c0_5 = arith.constant 0 : index
    %c1024 = arith.constant 1024 : index
    %3 = vector.load %arg3[%c0_5, %c1024] : memref<2x1792xf32, #tpu.memory_space<vmem>>, vector<2x768xf32>
    tpu.vector_store %arg3[%c0_5, %c1024], %2 {strides = array<i32>} : memref<2x1792xf32, #tpu.memory_space<vmem>>, vector<2x768xf32>,
    return
  }
  func.func @transform_0(%arg0: i32) -> (i32, i32) {
    %c0_i32 = arith.constant 0 : i32
    %c0_i32_0 = arith.constant 0 : i32
    return %arg0, %c0_i32 : i32, i32
  }
  func.func @transform_1(%arg0: i32) -> (i32, i32) {
    %c0_i32 = arith.constant 0 : i32
    %c0_i32_0 = arith.constant 0 : i32
    return %arg0, %c0_i32 : i32, i32
  }
  func.func @transform_2(%arg0: i32) -> (i32, i32) {
    %c0_i32 = arith.constant 0 : i32
    %c0_i32_0 = arith.constant 0 : i32
    return %arg0, %c0_i32 : i32, i32
  }
}

</mosaic_0001>

<llo_original>
// kernel: concat_block_forward.1
$region0: #{concat_block_forward.1}
  #allocation0 [shape = 'u32[]', space=smem, size = 0x4, offset = 0x4, fixed_abs, tag = 'smem constant byte address 0x4 - core index']
  #allocation1 [shape = 'u32[144,128]{1,0:T(1,128)}', space=vmem, size = 0x12000, scoped, tag = 'internal scratch']
  %s0 = inlined_call_operand.vmem [shape: f32[2,1024], index: 0, kind: input, shape index: {}]
  %s1 = inlined_call_operand.vmem [shape: f32[2,768], index: 1, kind: input, shape index: {}]
  %s2 = inlined_call_operand.vmem [shape: f32[2,1792], index: 2, kind: output, shape index: {}]
  %s3 = sld [smem:[#allocation0]]
  $region18: #{concat_block_forward.1} parent=0
    _
  %s5 = ssub.s32 1, %s3
  %s6 = scalar_select 0, %s5, %s3
  // Predicated region
  $region2: #{concat_block_forward.1} parent=0 // pred_check
    _
  $region3: #{concat_block_forward.1} parent=0 // pred_check_branch
    %8 = sbr.rel (0) target = $region5
  $region4: #{concat_block_forward.1} parent=0 // pred_region
    _
  $region5: #{concat_block_forward.1} parent=0 // pred_fallthru
    _
  // Predicated region
  $region6: #{concat_block_forward.1} parent=0 // pred_check
    _
  $region7: #{concat_block_forward.1} parent=0 // pred_check_branch
    %10 = sbr.rel (0) target = $region9
  $region8: #{concat_block_forward.1} parent=0 // pred_region
    _
  $region9: #{concat_block_forward.1} parent=0 // pred_fallthru
    _
  %v11 = vld [vmem:[%s0] sm:$0xff]
  %v12 = vld [vmem:[%s0 + $0x8] sm:$0xff]
  %13 = vst [vmem:[%s2] sm:$0xff] %v11
  %14 = vst [vmem:[%s2 + $0x8] sm:$0xff] %v12
  %v15 = vld [vmem:[%s1] sm:$0xff]
  %v16 = vld [vmem:[%s1 + $0x8] sm:$0xf]
  %17 = vst [vmem:[%s2 + $0x10] sm:$0xff] %v15
  %18 = vst [vmem:[%s2 + $0x18] sm:$0xf] %v16
  // Predicated region
  $region10: #{concat_block_forward.1} parent=0 // pred_check
    _
  $region11: #{concat_block_forward.1} parent=0 // pred_check_branch
    %20 = sbr.rel (0) target = $region13
  $region12: #{concat_block_forward.1} parent=0 // pred_region
    _
  $region13: #{concat_block_forward.1} parent=0 // pred_fallthru
    _
  // Predicated region
  $region14: #{concat_block_forward.1} parent=0 // pred_check
    _
  $region15: #{concat_block_forward.1} parent=0 // pred_check_branch
    %22 = sbr.rel (0) target = $region17
  $region16: #{concat_block_forward.1} parent=0 // pred_region
    _
  $region17: #{concat_block_forward.1} parent=0 // pred_fallthru
    _

</llo_original>
